<compile_context>
chip_gen: v5e
topology: v5e:2x2
jax: 0.10.0
libtpu: 0.0.40
codegen_flags: <defaults>
</compile_context>

<pallas_src>
import jax
import jax.numpy as jnp
from jax import lax
from jax.experimental import pallas as pl
from jax.experimental.pallas import tpu as pltpu


_UNROLL_MAX_MID = 4                    # fully unroll hidden-layer loop up to this
_BF16_MIN_HIDDEN = 128                 # below this the MXU has huge slack; keep f32
_SINGLE_BUFFER_PARAM_BYTES = 8 << 20   # Buffered(1) on params past this size


def _num_tensorcores():
    """2 on v7x (2 TensorCores/chip), 1 on v5e/v6e (and anything unknown)."""
    try:
        kind = jax.devices()[0].device_kind.lower()
    except Exception:
        return 1
    return 2 if ("v7" in kind or "7x" in kind) else 1


def _pick_block_m(N, H, num_tc):
    """Lane-aligned batch tile, generation- and vreg-budget-aware.

    vreg cap: ~2 live (H, block_m) f32 slabs -> 2*ceil(H/8)*(block_m/128) vregs;
    keep that at <= half the 64-vreg file (e.g. block_m<=512 at H=32).
    1 TC (v5e/v6e): one block whenever it fits (grid steps are pure overhead).
    2 TCs (v7x): split so both cores get work; prefer >=4 steps (>=2/core).
    """
    sub = -(-H // 8)                                   # sublane rows per column
    cap = max(128, (2048 // sub) // 128 * 128)         # <= ~32 live vregs
    if num_tc <= 1:
        if N <= cap:
            return N
        for cand in range(cap, 127, -128):
            if N % cand == 0:
                return cand
        return N                                       # fallback: single block
    for min_steps in (4, 2):
        upper = min(cap, (N // min_steps) // 128 * 128)
        for cand in range(upper, 127, -128):
            if N % cand == 0:
                return cand
    return N


def _make_mlp_kernel(depth, n_mid, unroll_mid, dot_dtype):
    """Kernel for the DeepNet forward pass in batch-on-lanes layout."""

    def kernel(*refs):
        # x_ref    : (1, block_m)           batch samples on the lane axis
        # w1_ref   : (H, 1)                 fc1 weight, PyTorch (out, in) layout
        # b_ref    : (depth, H, 1)          per-layer biases as column vectors
        # wmid_ref : (n_mid, H, H)          fc2..fc{depth-1} weights (only if n_mid>0)
        # wlast_ref: (1, H)                 fc{depth} weight
        # out_ref  : (1, block_m)
        if n_mid > 0:
            x_ref, w1_ref, b_ref, wmid_ref, wlast_ref, out_ref = refs
        else:
            x_ref, w1_ref, b_ref, wlast_ref, out_ref = refs
            wmid_ref = None

        x = x_ref[...]                                          # (1, bm) f32

        # Layer 1: K=1 contraction -> VPU broadcast outer product (no MXU).
        h = jnp.maximum(w1_ref[...] * x + b_ref[0], 0.0)        # (H, bm) f32

        # Hidden layers: (H,H) @ (H,bm) on the MXU, lane-dense results.
        if n_mid > 0:
            def layer(l, h):
                hw = jnp.dot(wmid_ref[l], h.astype(dot_dtype),
                             preferred_element_type=jnp.float32)
                return jnp.maximum(hw + b_ref[l + 1], 0.0)

            if unroll_mid:
                for l in range(n_mid):
                    h = layer(l, h)
            else:
                # Deep nets: keep one layer's weights live at a time.
                h = lax.fori_loop(0, n_mid, layer, h)

        # Final layer: (1,H) @ (H,bm) -> lane-dense (1, bm) row; no ReLU.
        out = jnp.dot(wlast_ref[...], h.astype(dot_dtype),
                      preferred_element_type=jnp.float32)
        out_ref[...] = (out + b_ref[depth - 1][0:1, :]).astype(out_ref.dtype)

    return kernel


def deepnet_forward(x, weights, biases, *, block_m=None, use_bf16_dot=None):
    """DeepNet forward with a single Pallas kernel.

    x       : (N, 1) float32
    weights : list of PyTorch-layout (out_features, in_features) float32 arrays
    biases  : list of (out_features,) float32 arrays
    returns : (N, 1) float32
    """
    depth = len(weights)
    assert depth >= 2 and len(biases) == depth
    H = weights[0].shape[0]
    n_mid = depth - 2
    N = x.shape[0]

    num_tc = _num_tensorcores()
    if block_m is None:
        block_m = _pick_block_m(N, H, num_tc)
    assert N % block_m == 0, "N must be a multiple of block_m"
    assert block_m % 128 == 0 or block_m == N, \
        "block_m must be lane-aligned (multiple of 128) or equal to N"
    grid = (N // block_m,)

    if use_bf16_dot is None:
        use_bf16_dot = H >= _BF16_MIN_HIDDEN
    dot_dtype = jnp.bfloat16 if use_bf16_dot else jnp.float32

    # --- pack parameters into <=4 resident arrays (constant index maps) ------
    w1 = weights[0].reshape(H, 1).astype(jnp.float32)        # VPU path stays f32
    w_last = weights[-1].reshape(1, H).astype(dot_dtype)

    b_stack = jnp.zeros((depth, H), jnp.float32)
    b_stack = b_stack.at[0, :].set(biases[0].astype(jnp.float32))
    for l in range(n_mid):
        b_stack = b_stack.at[l + 1, :].set(biases[l + 1].astype(jnp.float32))
    b_stack = b_stack.at[depth - 1, 0].set(biases[-1].astype(jnp.float32)[0])
    b_stack = b_stack.reshape(depth, H, 1)                   # column-vector biases

    params = [w1, b_stack]
    if n_mid > 0:
        w_mid = jnp.stack([w.astype(dot_dtype) for w in weights[1:-1]], axis=0)
        params.append(w_mid)
    params.append(w_last)                                    # no placeholder if n_mid==0

    # batch-on-lanes: x as a (1, N) row, output as a (1, N) row.
    x_row = x.reshape(1, N).astype(jnp.float32)

    # Resident parameter footprint drives the buffering / VMEM-limit decisions.
    param_bytes = sum(int(p.size) * p.dtype.itemsize for p in params)
    single_buffer_params = param_bytes > _SINGLE_BUFFER_PARAM_BYTES
    param_spec_kwargs = (
        dict(pipeline_mode=pl.Buffered(1)) if single_buffer_params else {})

    def param_spec(p):
        zeros = (0,) * p.ndim
        return pl.BlockSpec(p.shape, lambda i: zeros, **param_spec_kwargs)

    in_specs = [pl.BlockSpec((1, block_m), lambda i: (0, i))]     # x tiled on lanes
    in_specs += [param_spec(p) for p in params]
    out_specs = pl.BlockSpec((1, block_m), lambda i: (0, i))

    # Explicit VMEM limit only when the resident stack threatens the scoped
    # default (16 MiB on v5e, 32 MiB on v6e/v7x); never at small sizes.
    buf_factor = 1 if single_buffer_params else 2
    act_bytes = 4 * H * block_m * 4                  # h slab + dot temporaries
    io_bytes = 2 * 2 * 4 * block_m                   # x and out, double-buffered
    vmem_need = buf_factor * param_bytes + act_bytes + io_bytes + (1 << 20)
    vmem_limit = None
    if vmem_need > (12 << 20):
        phys_cap = (56 << 20) if num_tc >= 2 else (100 << 20)   # v7x: 64 MiB physical
        vmem_limit = int(min(vmem_need * 3 // 2, phys_cap))
    # TODO(synk): for depth*H^2 beyond VMEM, stream w_mid per layer via a second
    # "arbitrary" grid axis instead of keeping the whole stack resident.

    # Constant-index params are DMA'd once and stay resident -> count them once.
    cost = pl.CostEstimate(
        flops=int(2 * N * (H + n_mid * H * H + H)),
        transcendentals=0,
        bytes_accessed=int(4 * x_row.size + 4 * N + param_bytes),
    )

    kernel = _make_mlp_kernel(depth, n_mid, n_mid <= _UNROLL_MAX_MID, dot_dtype)

    out = pl.pallas_call(
        kernel,
        out_shape=jax.ShapeDtypeStruct((1, N), jnp.float32),
        grid_spec=pltpu.PrefetchScalarGridSpec(
            num_scalar_prefetch=0,
            grid=grid,
            in_specs=in_specs,
            out_specs=out_specs,
        ),
        compiler_params=pltpu.CompilerParams(
            dimension_semantics=("parallel",),
            vmem_limit_bytes=vmem_limit,
        ),
        cost_estimate=cost,
    )(x_row, *params)

    return out.reshape(N, 1)


def init_deepnet_params(key, depth, hidden_size):
    """Deterministic init matching nn.Linear default U(-1/sqrt(fan_in), +1/sqrt(fan_in)).

    Weights in PyTorch (out_features, in_features) layout, biases (out_features,).
    """
    hidden_size = max(1, hidden_size)
    depth = max(2, depth)
    dims = [1] + [hidden_size] * (depth - 1) + [1]
    weights, biases = [], []
    for layer in range(depth):
        fan_in, fan_out = dims[layer], dims[layer + 1]
        key, kw, kb = jax.random.split(key, 3)
        bound = 1.0 / jnp.sqrt(jnp.float32(fan_in))
        w = jax.random.uniform(kw, (fan_out, fan_in), jnp.float32, -bound, bound)
        b = jax.random.uniform(kb, (fan_out,), jnp.float32, -bound, bound)
        weights.append(w)
        biases.append(b)
    return weights, biases


def deepnet_reference(x, weights, biases):
    """Pure-JAX reference (PyTorch semantics: y = x @ W^T + b, ReLU except last)."""
    h = x
    for i, (w, b) in enumerate(zip(weights, biases)):
        h = h @ w.T + b
        if i < len(weights) - 1:
            h = jnp.maximum(h, 0.0)
    return h


if __name__ == "__main__":
    key = jax.random.PRNGKey(0)

    configs = [
        # (depth, hidden_size, N)
        (4, 32, 512),   # fc1:1->32, fc2/fc3:32->32, fc4:32->1 (unrolled hidden loop)
        (2, 32, 256),   # depth-2 path: no (H,H) weight stack operand at all
        (9, 32, 256),   # deep path: hidden layers via lax.fori_loop
    ]

    for depth, hidden_size, N in configs:
        key, kx, kp = jax.random.split(key, 3)
        x = jax.random.uniform(kx, (N, 1), jnp.float32, -3.0, 3.0)
        weights, biases = init_deepnet_params(kp, depth, hidden_size)

        out = jax.block_until_ready(deepnet_forward(x, weights, biases))
        ref = deepnet_reference(x, weights, biases)

        assert out.shape == (N, 1), out.shape
        max_err = float(jnp.max(jnp.abs(out - ref)))
        assert jnp.allclose(out, ref, atol=1e-4, rtol=1e-4), (
            f"depth={depth} H={hidden_size} N={N}: max abs err = {max_err}")

    print("KERNEL_OK")
</pallas_src>

<mosaic_0001>
module attributes {stable_mosaic.version = 11 : i64} {
  func.func @kernel(%arg0: i32, %arg1: memref<1x512xf32, #tpu.memory_space<vmem>>, %arg2: memref<32x1xf32, #tpu.memory_space<vmem>>, %arg3: memref<4x32x1xf32, #tpu.memory_space<vmem>>, %arg4: memref<2x32x32xf32, #tpu.memory_space<vmem>>, %arg5: memref<1x32xf32, #tpu.memory_space<vmem>>, %arg6: memref<1x512xf32, #tpu.memory_space<vmem>>) attributes {dimension_semantics = [#tpu.dimension_semantics<parallel>], iteration_bounds = array<i64: 1>, scalar_prefetch = 0 : i64, scratch_operands = 0 : i64, tpu.core_type = #tpu.core_type<tc>, window_params = [{transform_indices = @transform_0, window_bounds = array<i64: 1, 512>}, {pipeline_mode = #tpu.pipeline_mode<synchronous>, transform_indices = @transform_1, window_bounds = array<i64: 32, 1>}, {pipeline_mode = #tpu.pipeline_mode<synchronous>, transform_indices = @transform_2, window_bounds = array<i64: 4, 32, 1>}, {pipeline_mode = #tpu.pipeline_mode<synchronous>, transform_indices = @transform_3, window_bounds = array<i64: 2, 32, 32>}, {pipeline_mode = #tpu.pipeline_mode<synchronous>, transform_indices = @transform_4, window_bounds = array<i64: 1, 32>}, {transform_indices = @transform_5, window_bounds = array<i64: 1, 512>}]} {
    %c0 = arith.constant 0 : index
    %c0_0 = arith.constant 0 : index
    %0 = vector.load %arg1[%c0, %c0_0] : memref<1x512xf32, #tpu.memory_space<vmem>>, vector<1x512xf32>
    %c0_1 = arith.constant 0 : index
    %c0_2 = arith.constant 0 : index
    %1 = vector.load %arg2[%c0_1, %c0_2] : memref<32x1xf32, #tpu.memory_space<vmem>>, vector<32x1xf32>
    %2 = vector.broadcast %1 : vector<32x1xf32> to vector<32x512xf32>
    %3 = vector.broadcast %0 : vector<1x512xf32> to vector<32x512xf32>
    %4 = arith.mulf %2, %3 : vector<32x512xf32>
    %c0_3 = arith.constant 0 : index
    %c0_4 = arith.constant 0 : index
    %c0_5 = arith.constant 0 : index
    %5 = vector.load %arg3[%c0_3, %c0_4, %c0_5] : memref<4x32x1xf32, #tpu.memory_space<vmem>>, vector<1x32x1xf32>
    %6 = vector.shape_cast %5 : vector<1x32x1xf32> to vector<32x1xf32>
    %7 = vector.broadcast %6 : vector<32x1xf32> to vector<32x512xf32>
    %8 = arith.addf %4, %7 : vector<32x512xf32>
    %cst = arith.constant 0.000000e+00 : f32
    %9 = vector.broadcast %cst : f32 to vector<32x512xf32>
    %10 = arith.maximumf %8, %9 : vector<32x512xf32>
    %c0_6 = arith.constant 0 : index
    %c0_7 = arith.constant 0 : index
    %c0_8 = arith.constant 0 : index
    %11 = vector.load %arg4[%c0_6, %c0_7, %c0_8] : memref<2x32x32xf32, #tpu.memory_space<vmem>>, vector<1x32x32xf32>
    %12 = vector.shape_cast %11 : vector<1x32x32xf32> to vector<32x32xf32>
    %cst_9 = arith.constant dense<0.000000e+00> : vector<32x512xf32>
    %13 = tpu.matmul %12, %10, %cst_9 {dimension_numbers = #tpu.dot_dimension_numbers<[1], [0], [0], [1], [0, 0, 1, 1], [], []>} : vector<32x32xf32>, vector<32x512xf32>, vector<32x512xf32> -> vector<32x512xf32>
    %c1 = arith.constant 1 : index
    %c0_10 = arith.constant 0 : index
    %c0_11 = arith.constant 0 : index
    %14 = vector.load %arg3[%c1, %c0_10, %c0_11] : memref<4x32x1xf32, #tpu.memory_space<vmem>>, vector<1x32x1xf32>
    %15 = vector.shape_cast %14 : vector<1x32x1xf32> to vector<32x1xf32>
    %16 = vector.broadcast %15 : vector<32x1xf32> to vector<32x512xf32>
    %17 = arith.addf %13, %16 : vector<32x512xf32>
    %cst_12 = arith.constant 0.000000e+00 : f32
    %18 = vector.broadcast %cst_12 : f32 to vector<32x512xf32>
    %19 = arith.maximumf %17, %18 : vector<32x512xf32>
    %c1_13 = arith.constant 1 : index
    %c0_14 = arith.constant 0 : index
    %c0_15 = arith.constant 0 : index
    %20 = vector.load %arg4[%c1_13, %c0_14, %c0_15] : memref<2x32x32xf32, #tpu.memory_space<vmem>>, vector<1x32x32xf32>
    %21 = vector.shape_cast %20 : vector<1x32x32xf32> to vector<32x32xf32>
    %cst_16 = arith.constant dense<0.000000e+00> : vector<32x512xf32>
    %22 = tpu.matmul %21, %19, %cst_16 {dimension_numbers = #tpu.dot_dimension_numbers<[1], [0], [0], [1], [0, 0, 1, 1], [], []>} : vector<32x32xf32>, vector<32x512xf32>, vector<32x512xf32> -> vector<32x512xf32>
    %c2 = arith.constant 2 : index
    %c0_17 = arith.constant 0 : index
    %c0_18 = arith.constant 0 : index
    %23 = vector.load %arg3[%c2, %c0_17, %c0_18] : memref<4x32x1xf32, #tpu.memory_space<vmem>>, vector<1x32x1xf32>
    %24 = vector.shape_cast %23 : vector<1x32x1xf32> to vector<32x1xf32>
    %25 = vector.broadcast %24 : vector<32x1xf32> to vector<32x512xf32>
    %26 = arith.addf %22, %25 : vector<32x512xf32>
    %cst_19 = arith.constant 0.000000e+00 : f32
    %27 = vector.broadcast %cst_19 : f32 to vector<32x512xf32>
    %28 = arith.maximumf %26, %27 : vector<32x512xf32>
    %c0_20 = arith.constant 0 : index
    %c0_21 = arith.constant 0 : index
    %29 = vector.load %arg5[%c0_20, %c0_21] : memref<1x32xf32, #tpu.memory_space<vmem>>, vector<1x32xf32>
    %cst_22 = arith.constant dense<0.000000e+00> : vector<1x512xf32>
    %30 = tpu.matmul %29, %28, %cst_22 {dimension_numbers = #tpu.dot_dimension_numbers<[1], [0], [0], [1], [0, 0, 1, 1], [], []>} : vector<1x32xf32>, vector<32x512xf32>, vector<1x512xf32> -> vector<1x512xf32>
    %c3 = arith.constant 3 : index
    %c0_23 = arith.constant 0 : index
    %c0_24 = arith.constant 0 : index
    %31 = vector.load %arg3[%c3, %c0_23, %c0_24] : memref<4x32x1xf32, #tpu.memory_space<vmem>>, vector<1x32x1xf32>
    %32 = vector.shape_cast %31 : vector<1x32x1xf32> to vector<32x1xf32>
    %33 = vector.extract_strided_slice %32 {offsets = [0, 0], sizes = [1, 1], strides = [1, 1]} : vector<32x1xf32> to vector<1x1xf32>
    %34 = vector.broadcast %33 : vector<1x1xf32> to vector<1x512xf32>
    %35 = arith.addf %30, %34 : vector<1x512xf32>
    %c0_25 = arith.constant 0 : index
    %c0_26 = arith.constant 0 : index
    %36 = vector.load %arg6[%c0_25, %c0_26] : memref<1x512xf32, #tpu.memory_space<vmem>>, vector<1x512xf32>
    tpu.vector_store %arg6[%c0_25, %c0_26], %35 {strides = array<i32>} : memref<1x512xf32, #tpu.memory_space<vmem>>, vector<1x512xf32>,
    return
  }
  func.func @transform_0(%arg0: i32) -> (i32, i32) {
    %c0_i32 = arith.constant 0 : i32
    %c0_i32_0 = arith.constant 0 : i32
    return %c0_i32, %arg0 : i32, i32
  }
  func.func @transform_1(%arg0: i32) -> (i32, i32) {
    %c0_i32 = arith.constant 0 : i32
    %c0_i32_0 = arith.constant 0 : i32
    %c0_i32_1 = arith.constant 0 : i32
    return %c0_i32, %c0_i32_0 : i32, i32
  }
  func.func @transform_2(%arg0: i32) -> (i32, i32, i32) {
    %c0_i32 = arith.constant 0 : i32
    %c0_i32_0 = arith.constant 0 : i32
    %c0_i32_1 = arith.constant 0 : i32
    %c0_i32_2 = arith.constant 0 : i32
    return %c0_i32, %c0_i32_0, %c0_i32_1 : i32, i32, i32
  }
  func.func @transform_3(%arg0: i32) -> (i32, i32, i32) {
    %c0_i32 = arith.constant 0 : i32
    %c0_i32_0 = arith.constant 0 : i32
    %c0_i32_1 = arith.constant 0 : i32
    %c0_i32_2 = arith.constant 0 : i32
    return %c0_i32, %c0_i32_0, %c0_i32_1 : i32, i32, i32
  }
  func.func @transform_4(%arg0: i32) -> (i32, i32) {
    %c0_i32 = arith.constant 0 : i32
    %c0_i32_0 = arith.constant 0 : i32
    %c0_i32_1 = arith.constant 0 : i32
    return %c0_i32, %c0_i32_0 : i32, i32
  }
  func.func @transform_5(%arg0: i32) -> (i32, i32) {
    %c0_i32 = arith.constant 0 : i32
    %c0_i32_0 = arith.constant 0 : i32
    return %c0_i32, %arg0 : i32, i32
  }
}

</mosaic_0001>

<llo_original>
// kernel: tpu_custom_call.1
$region0: #{tpu_custom_call.1}
  #allocation0 [shape = 'u32[]', space=smem, size = 0x4, offset = 0x4, fixed_abs, tag = 'smem constant byte address 0x4 - core index']
  #allocation1 [shape = 'u32[72,128]{1,0:T(1,128)}', space=vmem, size = 0x9000, scoped, tag = 'internal scratch']
  %s0 = inlined_call_operand.vmem [shape: f32[1,512], index: 0, kind: input, shape index: {}]
  %s1 = inlined_call_operand.vmem [shape: f32[32,1], index: 1, kind: input, shape index: {}]
  %s2 = inlined_call_operand.vmem [shape: f32[4,32,1], index: 2, kind: input, shape index: {}]
  %s3 = inlined_call_operand.vmem [shape: f32[2,32,32], index: 3, kind: input, shape index: {}]
  %s4 = inlined_call_operand.vmem [shape: f32[1,32], index: 4, kind: input, shape index: {}]
  %s5 = inlined_call_operand.hbm [shape: f32[1,512], index: 5, kind: output, shape index: {}]
  %s6 = sld [smem:[#allocation0]]
  $region30: #{tpu_custom_call.1} parent=0
    _
  %s8 = ssub.s32 1, %s6
  %s9 = scalar_select 0, %s8, %s6
  $region1: #{tpu_custom_call.1} parent=0
    #allocation2 [shape = 'u8[2048]{0}', space=vmem, size = 0x800, scoped, tag = 'output window, operand 0, single buffered']
    #allocation3 [shape = 's32[1]{0}', space=sflag, size = 0x4, scoped, tag = 'scoped memory for tpu_custom_call.1']
    %10 = vsyncpa [#allocation3], 0
    // Predicated region
    $region2: #{tpu_custom_call.1} parent=1 // pred_check
      _
    $region3: #{tpu_custom_call.1} parent=1 // pred_check_branch
      %12 = sbr.rel (0) target = $region5
    $region4: #{tpu_custom_call.1} parent=1 // pred_region
      _
    $region5: #{tpu_custom_call.1} parent=1 // pred_fallthru
      _
    // Predicated region
    $region6: #{tpu_custom_call.1} parent=1 // pred_check
      _
    $region7: #{tpu_custom_call.1} parent=1 // pred_check_branch
      %14 = sbr.rel (0) target = $region9
    $region8: #{tpu_custom_call.1} parent=1 // pred_region
      _
    $region9: #{tpu_custom_call.1} parent=1 // pred_fallthru
      _
    // Predicated region
    $region10: #{tpu_custom_call.1} parent=1 // pred_check
      _
    $region11: #{tpu_custom_call.1} parent=1 // pred_check_branch
      %16 = sbr.rel (0) target = $region13
    $region12: #{tpu_custom_call.1} parent=1 // pred_region
      _
    $region13: #{tpu_custom_call.1} parent=1 // pred_fallthru
      _
    // Predicated region
    $region14: #{tpu_custom_call.1} parent=1 // pred_check
      _
    $region15: #{tpu_custom_call.1} parent=1 // pred_check_branch
      %18 = sbr.rel (0) target = $region17
    $region16: #{tpu_custom_call.1} parent=1 // pred_region
      _
    $region17: #{tpu_custom_call.1} parent=1 // pred_fallthru
      _
    // Predicated region
    $region18: #{tpu_custom_call.1} parent=1 // pred_check
      _
    $region19: #{tpu_custom_call.1} parent=1 // pred_check_branch
      %20 = sbr.rel (0) target = $region21
    $region20: #{tpu_custom_call.1} parent=1 // pred_region
      _
    $region21: #{tpu_custom_call.1} parent=1 // pred_fallthru
      _
    %v21 = vld [vmem:[%s0] sm:$0xf]
    %v22 = vld [vmem:[%s1] sm:$0xff]
    %v23 = vld [vmem:[%s1 + $0x8] sm:$0xff]
    %v24 = vld [vmem:[%s1 + $0x10] sm:$0xff]
    %v25 = vld [vmem:[%s1 + $0x18] sm:$0xff]
    %27 = vset.pattern.permute.xlu0 0
    %28 = vperm.xlu0 %27, %v22
    %v29 = vpop.permute.xlu0 %28
    %32 = vset.pattern.permute.xlu0 0
    %33 = vperm.xlu0 %32, %v23
    %v34 = vpop.permute.xlu0 %33
    %37 = vset.pattern.permute.xlu0 0
    %38 = vperm.xlu0 %37, %v24
    %v39 = vpop.permute.xlu0 %38
    %42 = vset.pattern.permute.xlu0 0
    %43 = vperm.xlu0 %42, %v25
    %v44 = vpop.permute.xlu0 %43
    %v47 = vperm.slane %v21, 0
    %v48 = vperm.slane %v21, 1
    %v49 = vperm.slane %v21, 2
    %v50 = vperm.slane %v21, 3
    %v55 = vmul.f32 %v29, %v47
    %v56 = vmul.f32 %v29, %v48
    %v57 = vmul.f32 %v29, %v49
    %v58 = vmul.f32 %v29, %v50
    %v59 = vmul.f32 %v34, %v47
    %v60 = vmul.f32 %v34, %v48
    %v61 = vmul.f32 %v34, %v49
    %v62 = vmul.f32 %v34, %v50
    %v63 = vmul.f32 %v39, %v47
    %v64 = vmul.f32 %v39, %v48
    %v65 = vmul.f32 %v39, %v49
    %v66 = vmul.f32 %v39, %v50
    %v67 = vmul.f32 %v44, %v47
    %v68 = vmul.f32 %v44, %v48
    %v69 = vmul.f32 %v44, %v49
    %v70 = vmul.f32 %v44, %v50
    %v71 = vld [vmem:[%s2] sm:$0xff]
    %v72 = vld [vmem:[%s2 + $0x8] sm:$0xff]
    %v73 = vld [vmem:[%s2 + $0x10] sm:$0xff]
    %v74 = vld [vmem:[%s2 + $0x18] sm:$0xff]
    %76 = vset.pattern.permute.xlu0 0
    %77 = vperm.xlu0 %76, %v71
    %v78 = vpop.permute.xlu0 %77
    %81 = vset.pattern.permute.xlu0 0
    %82 = vperm.xlu0 %81, %v72
    %v83 = vpop.permute.xlu0 %82
    %86 = vset.pattern.permute.xlu0 0
    %87 = vperm.xlu0 %86, %v73
    %v88 = vpop.permute.xlu0 %87
    %91 = vset.pattern.permute.xlu0 0
    %92 = vperm.xlu0 %91, %v74
    %v93 = vpop.permute.xlu0 %92
    %v95 = vadd.f32 %v55, %v78
    %v96 = vadd.f32 %v56, %v78
    %v97 = vadd.f32 %v57, %v78
    %v98 = vadd.f32 %v58, %v78
    %v99 = vadd.f32 %v59, %v83
    %v100 = vadd.f32 %v60, %v83
    %v101 = vadd.f32 %v61, %v83
    %v102 = vadd.f32 %v62, %v83
    %v103 = vadd.f32 %v63, %v88
    %v104 = vadd.f32 %v64, %v88
    %v105 = vadd.f32 %v65, %v88
    %v106 = vadd.f32 %v66, %v88
    %v107 = vadd.f32 %v67, %v93
    %v108 = vadd.f32 %v68, %v93
    %v109 = vadd.f32 %v69, %v93
    %v110 = vadd.f32 %v70, %v93
    %v111 = vmax.f32 %v95, 0.0
    %v112 = vmax.f32 %v96, 0.0
    %v113 = vmax.f32 %v97, 0.0
    %v114 = vmax.f32 %v98, 0.0
    %v115 = vmax.f32 %v99, 0.0
    %v116 = vmax.f32 %v100, 0.0
    %v117 = vmax.f32 %v101, 0.0
    %v118 = vmax.f32 %v102, 0.0
    %v119 = vmax.f32 %v103, 0.0
    %v120 = vmax.f32 %v104, 0.0
    %v121 = vmax.f32 %v105, 0.0
    %v122 = vmax.f32 %v106, 0.0
    %v123 = vmax.f32 %v107, 0.0
    %v124 = vmax.f32 %v108, 0.0
    %v125 = vmax.f32 %v109, 0.0
    %v126 = vmax.f32 %v110, 0.0
    %v127 = vld [vmem:[%s3] sm:$0xff]
    %v128 = vld [vmem:[%s3 + $0x8] sm:$0xff]
    %v129 = vld [vmem:[%s3 + $0x10] sm:$0xff]
    %v130 = vld [vmem:[%s3 + $0x18] sm:$0xff]
    %s131 = scalar_lea.vmem %s2, 32
    %v132 = vld [vmem:[%s131] sm:$0xff]
    %v133 = vld [vmem:[%s131 + $0x8] sm:$0xff]
    %v134 = vld [vmem:[%s131 + $0x10] sm:$0xff]
    %v135 = vld [vmem:[%s131 + $0x18] sm:$0xff]
    %137 = vset.pattern.permute.xlu0 0
    %138 = vperm.xlu0 %137, %v132
    %v139 = vpop.permute.xlu0 %138
    %142 = vset.pattern.permute.xlu0 0
    %143 = vperm.xlu0 %142, %v133
    %v144 = vpop.permute.xlu0 %143
    %147 = vset.pattern.permute.xlu0 0
    %148 = vperm.xlu0 %147, %v134
    %v149 = vpop.permute.xlu0 %148
    %152 = vset.pattern.permute.xlu0 0
    %153 = vperm.xlu0 %152, %v135
    %v154 = vpop.permute.xlu0 %153
    %vm156 = vcmask 261120
    %v158 = vsel %vm156, %v127, 0
    %v161 = vsel %vm156, %v128, 0
    %v164 = vsel %vm156, %v129, 0
    %v167 = vsel %vm156, %v130, 0
    %169 = vmatpush.msra.mxu0 0.0
    %170 = vmatpush.msra.mxu0 0.0
    %171 = vmatpush.msra.mxu0 0.0
    %172 = vmatpush.msra.mxu0 0.0
    %173 = vmatpush.msra.mxu0 0.0
    %174 = vmatpush.msra.mxu0 0.0
    %175 = vmatpush.msra.mxu0 0.0
    %176 = vmatpush.msra.mxu0 0.0
    %177 = vmatpush.msra.mxu0 0.0
    %178 = vmatpush.msra.mxu0 0.0
    %179 = vmatpush.msra.mxu0 0.0
    %180 = vmatpush.msra.mxu0 0.0
    %181 = vmatpush.msra.mxu0 %v123
    %182 = vmatpush.msra.mxu0 %v119
    %183 = vmatpush.msra.mxu0 %v115
    %184 = vmatpush.msra.mxu0 %v111
    %185 = vmatmul.f32.gmra.mxu0 %v158
    %v186 = vpop.f32.mrf.mxu0
    %v187 = vadd.f32 %v139, %v186
    %188 = vmatmul.f32.gmra.mxu0 %v161
    %v189 = vpop.f32.mrf.mxu0
    %v190 = vadd.f32 %v144, %v189
    %191 = vmatmul.f32.gmra.mxu0 %v164
    %v192 = vpop.f32.mrf.mxu0
    %v193 = vadd.f32 %v149, %v192
    %194 = vmatmul.f32.gmra.mxu0 %v167
    %v195 = vpop.f32.mrf.mxu0
    %v196 = vadd.f32 %v154, %v195
    %197 = vdwg.mxu0
    %198 = vmatpush.msra.mxu0 0.0
    %199 = vmatpush.msra.mxu0 0.0
    %200 = vmatpush.msra.mxu0 0.0
    %201 = vmatpush.msra.mxu0 0.0
    %202 = vmatpush.msra.mxu0 0.0
    %203 = vmatpush.msra.mxu0 0.0
    %204 = vmatpush.msra.mxu0 0.0
    %205 = vmatpush.msra.mxu0 0.0
    %206 = vmatpush.msra.mxu0 0.0
    %207 = vmatpush.msra.mxu0 0.0
    %208 = vmatpush.msra.mxu0 0.0
    %209 = vmatpush.msra.mxu0 0.0
    %210 = vmatpush.msra.mxu0 %v124
    %211 = vmatpush.msra.mxu0 %v120
    %212 = vmatpush.msra.mxu0 %v116
    %213 = vmatpush.msra.mxu0 %v112
    %214 = vmatmul.f32.gmra.mxu0 %v158
    %v215 = vpop.f32.mrf.mxu0
    %v216 = vadd.f32 %v139, %v215
    %217 = vmatmul.f32.gmra.mxu0 %v161
    %v218 = vpop.f32.mrf.mxu0
    %v219 = vadd.f32 %v144, %v218
    %220 = vmatmul.f32.gmra.mxu0 %v164
    %v221 = vpop.f32.mrf.mxu0
    %v222 = vadd.f32 %v149, %v221
    %223 = vmatmul.f32.gmra.mxu0 %v167
    %v224 = vpop.f32.mrf.mxu0
    %v225 = vadd.f32 %v154, %v224
    %226 = vdwg.mxu0
    %227 = vmatpush.msra.mxu0 0.0
    %228 = vmatpush.msra.mxu0 0.0
    %229 = vmatpush.msra.mxu0 0.0
    %230 = vmatpush.msra.mxu0 0.0
    %231 = vmatpush.msra.mxu0 0.0
    %232 = vmatpush.msra.mxu0 0.0
    %233 = vmatpush.msra.mxu0 0.0
    %234 = vmatpush.msra.mxu0 0.0
    %235 = vmatpush.msra.mxu0 0.0
    %236 = vmatpush.msra.mxu0 0.0
    %237 = vmatpush.msra.mxu0 0.0
    %238 = vmatpush.msra.mxu0 0.0
    %239 = vmatpush.msra.mxu0 %v125
    %240 = vmatpush.msra.mxu0 %v121
    %241 = vmatpush.msra.mxu0 %v117
    %242 = vmatpush.msra.mxu0 %v113
    %243 = vmatmul.f32.gmra.mxu0 %v158
    %v244 = vpop.f32.mrf.mxu0
    %v245 = vadd.f32 %v139, %v244
    %246 = vmatmul.f32.gmra.mxu0 %v161
    %v247 = vpop.f32.mrf.mxu0
    %v248 = vadd.f32 %v144, %v247
    %249 = vmatmul.f32.gmra.mxu0 %v164
    %v250 = vpop.f32.mrf.mxu0
    %v251 = vadd.f32 %v149, %v250
    %252 = vmatmul.f32.gmra.mxu0 %v167
    %v253 = vpop.f32.mrf.mxu0
    %v254 = vadd.f32 %v154, %v253
    %255 = vdwg.mxu0
    %256 = vmatpush.msra.mxu0 0.0
    %257 = vmatpush.msra.mxu0 0.0
    %258 = vmatpush.msra.mxu0 0.0
    %259 = vmatpush.msra.mxu0 0.0
    %260 = vmatpush.msra.mxu0 0.0
    %261 = vmatpush.msra.mxu0 0.0
    %262 = vmatpush.msra.mxu0 0.0
    %263 = vmatpush.msra.mxu0 0.0
    %264 = vmatpush.msra.mxu0 0.0
    %265 = vmatpush.msra.mxu0 0.0
    %266 = vmatpush.msra.mxu0 0.0
    %267 = vmatpush.msra.mxu0 0.0
    %268 = vmatpush.msra.mxu0 %v126
    %269 = vmatpush.msra.mxu0 %v122
    %270 = vmatpush.msra.mxu0 %v118
    %271 = vmatpush.msra.mxu0 %v114
    %272 = vmatmul.f32.gmra.mxu0 %v158
    %v273 = vpop.f32.mrf.mxu0
    %v274 = vadd.f32 %v139, %v273
    %275 = vmatmul.f32.gmra.mxu0 %v161
    %v276 = vpop.f32.mrf.mxu0
    %v277 = vadd.f32 %v144, %v276
    %278 = vmatmul.f32.gmra.mxu0 %v164
    %v279 = vpop.f32.mrf.mxu0
    %v280 = vadd.f32 %v149, %v279
    %281 = vmatmul.f32.gmra.mxu0 %v167
    %v282 = vpop.f32.mrf.mxu0
    %v283 = vadd.f32 %v154, %v282
    %284 = vdwg.mxu0
    %v285 = vmax.f32 %v187, 0.0
    %v286 = vmax.f32 %v216, 0.0
    %v287 = vmax.f32 %v245, 0.0
    %v288 = vmax.f32 %v274, 0.0
    %v289 = vmax.f32 %v190, 0.0
    %v290 = vmax.f32 %v219, 0.0
    %v291 = vmax.f32 %v248, 0.0
    %v292 = vmax.f32 %v277, 0.0
    %v293 = vmax.f32 %v193, 0.0
    %v294 = vmax.f32 %v222, 0.0
    %v295 = vmax.f32 %v251, 0.0
    %v296 = vmax.f32 %v280, 0.0
    %v297 = vmax.f32 %v196, 0.0
    %v298 = vmax.f32 %v225, 0.0
    %v299 = vmax.f32 %v254, 0.0
    %v300 = vmax.f32 %v283, 0.0
    %s301 = scalar_lea.vmem %s3, 32
    %v302 = vld [vmem:[%s301] sm:$0xff]
    %v303 = vld [vmem:[%s301 + $0x8] sm:$0xff]
    %v304 = vld [vmem:[%s301 + $0x10] sm:$0xff]
    %v305 = vld [vmem:[%s301 + $0x18] sm:$0xff]
    %s306 = scalar_lea.vmem %s2, 64
    %v307 = vld [vmem:[%s306] sm:$0xff]
    %v308 = vld [vmem:[%s306 + $0x8] sm:$0xff]
    %v309 = vld [vmem:[%s306 + $0x10] sm:$0xff]
    %v310 = vld [vmem:[%s306 + $0x18] sm:$0xff]
    %312 = vset.pattern.permute.xlu0 0
    %313 = vperm.xlu0 %312, %v307
    %v314 = vpop.permute.xlu0 %313
    %317 = vset.pattern.permute.xlu0 0
    %318 = vperm.xlu0 %317, %v308
    %v319 = vpop.permute.xlu0 %318
    %322 = vset.pattern.permute.xlu0 0
    %323 = vperm.xlu0 %322, %v309
    %v324 = vpop.permute.xlu0 %323
    %327 = vset.pattern.permute.xlu0 0
    %328 = vperm.xlu0 %327, %v310
    %v329 = vpop.permute.xlu0 %328
    %v332 = vsel %vm156, %v302, 0
    %v335 = vsel %vm156, %v303, 0
    %v338 = vsel %vm156, %v304, 0
    %v341 = vsel %vm156, %v305, 0
    %343 = vmatpush.msra.mxu0 0.0
    %344 = vmatpush.msra.mxu0 0.0
    %345 = vmatpush.msra.mxu0 0.0
    %346 = vmatpush.msra.mxu0 0.0
    %347 = vmatpush.msra.mxu0 0.0
    %348 = vmatpush.msra.mxu0 0.0
    %349 = vmatpush.msra.mxu0 0.0
    %350 = vmatpush.msra.mxu0 0.0
    %351 = vmatpush.msra.mxu0 0.0
    %352 = vmatpush.msra.mxu0 0.0
    %353 = vmatpush.msra.mxu0 0.0
    %354 = vmatpush.msra.mxu0 0.0
    %355 = vmatpush.msra.mxu0 %v297
    %356 = vmatpush.msra.mxu0 %v293
    %357 = vmatpush.msra.mxu0 %v289
    %358 = vmatpush.msra.mxu0 %v285
    %359 = vmatmul.f32.gmra.mxu0 %v332
    %v360 = vpop.f32.mrf.mxu0
    %v361 = vadd.f32 %v314, %v360
    %362 = vmatmul.f32.gmra.mxu0 %v335
    %v363 = vpop.f32.mrf.mxu0
    %v364 = vadd.f32 %v319, %v363
    %365 = vmatmul.f32.gmra.mxu0 %v338
    %v366 = vpop.f32.mrf.mxu0
    %v367 = vadd.f32 %v324, %v366
    %368 = vmatmul.f32.gmra.mxu0 %v341
    %v369 = vpop.f32.mrf.mxu0
    %v370 = vadd.f32 %v329, %v369
    %371 = vdwg.mxu0
    %372 = vmatpush.msra.mxu0 0.0
    %373 = vmatpush.msra.mxu0 0.0
    %374 = vmatpush.msra.mxu0 0.0
    %375 = vmatpush.msra.mxu0 0.0
    %376 = vmatpush.msra.mxu0 0.0
    %377 = vmatpush.msra.mxu0 0.0
    %378 = vmatpush.msra.mxu0 0.0
    %379 = vmatpush.msra.mxu0 0.0
    %380 = vmatpush.msra.mxu0 0.0
    %381 = vmatpush.msra.mxu0 0.0
    %382 = vmatpush.msra.mxu0 0.0
    %383 = vmatpush.msra.mxu0 0.0
    %384 = vmatpush.msra.mxu0 %v298
    %385 = vmatpush.msra.mxu0 %v294
    %386 = vmatpush.msra.mxu0 %v290
    %387 = vmatpush.msra.mxu0 %v286
    %388 = vmatmul.f32.gmra.mxu0 %v332
    %v389 = vpop.f32.mrf.mxu0
    %v390 = vadd.f32 %v314, %v389
    %391 = vmatmul.f32.gmra.mxu0 %v335
    %v392 = vpop.f32.mrf.mxu0
    %v393 = vadd.f32 %v319, %v392
    %394 = vmatmul.f32.gmra.mxu0 %v338
    %v395 = vpop.f32.mrf.mxu0
    %v396 = vadd.f32 %v324, %v395
    %397 = vmatmul.f32.gmra.mxu0 %v341
    %v398 = vpop.f32.mrf.mxu0
    %v399 = vadd.f32 %v329, %v398
    %400 = vdwg.mxu0
    %401 = vmatpush.msra.mxu0 0.0
    %402 = vmatpush.msra.mxu0 0.0
    %403 = vmatpush.msra.mxu0 0.0
    %404 = vmatpush.msra.mxu0 0.0
    %405 = vmatpush.msra.mxu0 0.0
    %406 = vmatpush.msra.mxu0 0.0
    %407 = vmatpush.msra.mxu0 0.0
    %408 = vmatpush.msra.mxu0 0.0
    %409 = vmatpush.msra.mxu0 0.0
    %410 = vmatpush.msra.mxu0 0.0
    %411 = vmatpush.msra.mxu0 0.0
    %412 = vmatpush.msra.mxu0 0.0
    %413 = vmatpush.msra.mxu0 %v299
    %414 = vmatpush.msra.mxu0 %v295
    %415 = vmatpush.msra.mxu0 %v291
    %416 = vmatpush.msra.mxu0 %v287
    %417 = vmatmul.f32.gmra.mxu0 %v332
    %v418 = vpop.f32.mrf.mxu0
    %v419 = vadd.f32 %v314, %v418
    %420 = vmatmul.f32.gmra.mxu0 %v335
    %v421 = vpop.f32.mrf.mxu0
    %v422 = vadd.f32 %v319, %v421
    %423 = vmatmul.f32.gmra.mxu0 %v338
    %v424 = vpop.f32.mrf.mxu0
    %v425 = vadd.f32 %v324, %v424
    %426 = vmatmul.f32.gmra.mxu0 %v341
    %v427 = vpop.f32.mrf.mxu0
    %v428 = vadd.f32 %v329, %v427
    %429 = vdwg.mxu0
    %430 = vmatpush.msra.mxu0 0.0
    %431 = vmatpush.msra.mxu0 0.0
    %432 = vmatpush.msra.mxu0 0.0
    %433 = vmatpush.msra.mxu0 0.0
    %434 = vmatpush.msra.mxu0 0.0
    %435 = vmatpush.msra.mxu0 0.0
    %436 = vmatpush.msra.mxu0 0.0
    %437 = vmatpush.msra.mxu0 0.0
    %438 = vmatpush.msra.mxu0 0.0
    %439 = vmatpush.msra.mxu0 0.0
    %440 = vmatpush.msra.mxu0 0.0
    %441 = vmatpush.msra.mxu0 0.0
    %442 = vmatpush.msra.mxu0 %v300
    %443 = vmatpush.msra.mxu0 %v296
    %444 = vmatpush.msra.mxu0 %v292
    %445 = vmatpush.msra.mxu0 %v288
    %446 = vmatmul.f32.gmra.mxu0 %v332
    %v447 = vpop.f32.mrf.mxu0
    %v448 = vadd.f32 %v314, %v447
    %449 = vmatmul.f32.gmra.mxu0 %v335
    %v450 = vpop.f32.mrf.mxu0
    %v451 = vadd.f32 %v319, %v450
    %452 = vmatmul.f32.gmra.mxu0 %v338
    %v453 = vpop.f32.mrf.mxu0
    %v454 = vadd.f32 %v324, %v453
    %455 = vmatmul.f32.gmra.mxu0 %v341
    %v456 = vpop.f32.mrf.mxu0
    %v457 = vadd.f32 %v329, %v456
    %458 = vdwg.mxu0
    %v459 = vmax.f32 %v361, 0.0
    %v460 = vmax.f32 %v390, 0.0
    %v461 = vmax.f32 %v419, 0.0
    %v462 = vmax.f32 %v448, 0.0
    %v463 = vmax.f32 %v364, 0.0
    %v464 = vmax.f32 %v393, 0.0
    %v465 = vmax.f32 %v422, 0.0
    %v466 = vmax.f32 %v451, 0.0
    %v467 = vmax.f32 %v367, 0.0
    %v468 = vmax.f32 %v396, 0.0
    %v469 = vmax.f32 %v425, 0.0
    %v470 = vmax.f32 %v454, 0.0
    %v471 = vmax.f32 %v370, 0.0
    %v472 = vmax.f32 %v399, 0.0
    %v473 = vmax.f32 %v428, 0.0
    %v474 = vmax.f32 %v457, 0.0
    %v475 = vld [vmem:[%s4] sm:$0x1]
    %s476 = scalar_lea.vmem %s2, 96
    %v477 = vld [vmem:[%s476] sm:$0xff]
    %479 = vset.pattern.permute.xlu0 0
    %480 = vperm.xlu0 %479, %v477
    %v481 = vpop.permute.xlu0 %480
    %v484 = vsel %vm156, %v475, 0
    %486 = vmatpush.msra.mxu0 0.0
    %487 = vmatpush.msra.mxu0 0.0
    %488 = vmatpush.msra.mxu0 0.0
    %489 = vmatpush.msra.mxu0 0.0
    %490 = vmatpush.msra.mxu0 0.0
    %491 = vmatpush.msra.mxu0 0.0
    %492 = vmatpush.msra.mxu0 0.0
    %493 = vmatpush.msra.mxu0 0.0
    %494 = vmatpush.msra.mxu0 0.0
    %495 = vmatpush.msra.mxu0 0.0
    %496 = vmatpush.msra.mxu0 0.0
    %497 = vmatpush.msra.mxu0 0.0
    %498 = vmatpush.msra.mxu0 %v471
    %499 = vmatpush.msra.mxu0 %v467
    %500 = vmatpush.msra.mxu0 %v463
    %501 = vmatpush.msra.mxu0 %v459
    %502 = vmatmul.f32.gmra.mxu0 %v484
    %v503 = vpop.f32.mrf.mxu0
    %v504 = vadd.f32 %v481, %v503
    %505 = vdwg.mxu0
    %506 = vmatpush.msra.mxu0 0.0
    %507 = vmatpush.msra.mxu0 0.0
    %508 = vmatpush.msra.mxu0 0.0
    %509 = vmatpush.msra.mxu0 0.0
    %510 = vmatpush.msra.mxu0 0.0
    %511 = vmatpush.msra.mxu0 0.0
    %512 = vmatpush.msra.mxu0 0.0
    %513 = vmatpush.msra.mxu0 0.0
    %514 = vmatpush.msra.mxu0 0.0
    %515 = vmatpush.msra.mxu0 0.0
    %516 = vmatpush.msra.mxu0 0.0
    %517 = vmatpush.msra.mxu0 0.0
    %518 = vmatpush.msra.mxu0 %v472
    %519 = vmatpush.msra.mxu0 %v468
    %520 = vmatpush.msra.mxu0 %v464
    %521 = vmatpush.msra.mxu0 %v460
    %522 = vmatmul.f32.gmra.mxu0 %v484
    %v523 = vpop.f32.mrf.mxu0
    %v524 = vadd.f32 %v481, %v523
    %525 = vdwg.mxu0
    %526 = vmatpush.msra.mxu0 0.0
    %527 = vmatpush.msra.mxu0 0.0
    %528 = vmatpush.msra.mxu0 0.0
    %529 = vmatpush.msra.mxu0 0.0
    %530 = vmatpush.msra.mxu0 0.0
    %531 = vmatpush.msra.mxu0 0.0
    %532 = vmatpush.msra.mxu0 0.0
    %533 = vmatpush.msra.mxu0 0.0
    %534 = vmatpush.msra.mxu0 0.0
    %535 = vmatpush.msra.mxu0 0.0
    %536 = vmatpush.msra.mxu0 0.0
    %537 = vmatpush.msra.mxu0 0.0
    %538 = vmatpush.msra.mxu0 %v473
    %539 = vmatpush.msra.mxu0 %v469
    %540 = vmatpush.msra.mxu0 %v465
    %541 = vmatpush.msra.mxu0 %v461
    %542 = vmatmul.f32.gmra.mxu0 %v484
    %v543 = vpop.f32.mrf.mxu0
    %v544 = vadd.f32 %v481, %v543
    %545 = vdwg.mxu0
    %546 = vmatpush.msra.mxu0 0.0
    %547 = vmatpush.msra.mxu0 0.0
    %548 = vmatpush.msra.mxu0 0.0
    %549 = vmatpush.msra.mxu0 0.0
    %550 = vmatpush.msra.mxu0 0.0
    %551 = vmatpush.msra.mxu0 0.0
    %552 = vmatpush.msra.mxu0 0.0
    %553 = vmatpush.msra.mxu0 0.0
    %554 = vmatpush.msra.mxu0 0.0
    %555 = vmatpush.msra.mxu0 0.0
    %556 = vmatpush.msra.mxu0 0.0
    %557 = vmatpush.msra.mxu0 0.0
    %558 = vmatpush.msra.mxu0 %v474
    %559 = vmatpush.msra.mxu0 %v470
    %560 = vmatpush.msra.mxu0 %v466
    %561 = vmatpush.msra.mxu0 %v462
    %562 = vmatmul.f32.gmra.mxu0 %v484
    %v563 = vpop.f32.mrf.mxu0
    %v564 = vadd.f32 %v481, %v563
    %565 = vdwg.mxu0
    %v570 = vrot.slane %v524, 7
    %v571 = vrot.slane %v544, 6
    %v572 = vrot.slane %v564, 5
    %vm573 = vcmask 1040384
    %v574 = vsel %vm573, %v504, %v570
    %vm575 = vcmask 1042434
    %v576 = vsel %vm575, %v571, %v572
    %vm577 = vcmask 1041408
    %v578 = vsel %vm577, %v574, %v576
    %v580 = vlaneseq
    %vm581 = vcmp.ge.s32.totalorder %v580, 0
    %vm582 = vcmp.lt.s32.totalorder %v580, 512
    %vm583 = vmand %vm581, %vm582
    %584 = vst.msk [vmem:[#allocation2] sm:$0xf] %vm583, %v578
    // Predicated region
    $region22: #{tpu_custom_call.1} parent=1 // pred_check
      _
    $region23: #{tpu_custom_call.1} parent=1 // pred_check_branch
      %586 = sbr.rel (0) target = $region25
    $region24: #{tpu_custom_call.1} parent=1 // pred_region
      %588 = vsyncadd [#allocation3], 0
      %s590 = sshll.u32 [#allocation2], 4
      %s591 = int_to_ptr.vmem [resolvable:$true] %s590
      %s592 = sshll.u32 %s5, 4
      %s593 = int_to_ptr.hbm [resolvable:$true] %s592
      %595 = dma.vmem_to_hbm [thread:$0]  %s591, 64, %s593, [#allocation3]
    $region25: #{tpu_custom_call.1} parent=1 // pred_fallthru
      _
    // Predicated region
    $region26: #{tpu_custom_call.1} parent=1 // pred_check
      _
    $region27: #{tpu_custom_call.1} parent=1 // pred_check_branch
      %597 = sbr.rel (0) target = $region29
    $region28: #{tpu_custom_call.1} parent=1 // pred_region
      %599 = dma.done [#allocation3], 64
    $region29: #{tpu_custom_call.1} parent=1 // pred_fallthru
      _
    %600 = vsyncpa [#allocation3], 1

</llo_original>
